<compile_context>
chip_gen: v7x
topology: tpu7x:2x2x1
jax: 0.10.0
libtpu: 0.0.40
codegen_flags: <defaults>
</compile_context>

<pallas_src>
import numpy as np
import jax
import jax.numpy as jnp
from jax.experimental import pallas as pl
from jax.experimental.pallas import tpu as pltpu


def _bilinear_matrix(out_size: int, in_size: int) -> np.ndarray:
    """Row-interpolation matrix M (out_size, in_size) matching
    F.interpolate(mode='bilinear', align_corners=False) along one axis."""
    scale = in_size / out_size
    i = np.arange(out_size)
    src = (i + 0.5) * scale - 0.5
    src = np.clip(src, 0.0, None)                 # PyTorch clamps negative src to 0
    i0 = np.minimum(np.floor(src).astype(np.int64), in_size - 1)
    i1 = np.minimum(i0 + 1, in_size - 1)
    frac = (src - i0).astype(np.float32)
    M = np.zeros((out_size, in_size), dtype=np.float32)
    M[i, i0] += (1.0 - frac)
    M[i, i1] += frac
    return M


def _plain_decoder_kernel(x_ref, w_ref, b_ref, mt_ref, out_ref):
    x = x_ref[0]            # (C_in, H*W)            lane-dense input
    w = w_ref[...]          # (C_out, C_in)
    b = b_ref[...]          # (C_out, 1)
    mt = mt_ref[...]        # (H*W, Ho*Wo)           kron(mh, mw).T

    # 1x1 convolution == per-pixel channel matmul (dropout is identity in eval).
    y = jnp.dot(w, x, preferred_element_type=jnp.float32) + b        # (C_out, H*W) f32

    # Fused bilinear resize: single MXU matmul against the Kronecker matrix.
    z = jnp.dot(y.astype(mt.dtype), mt,
                preferred_element_type=jnp.float32)                  # (C_out, Ho*Wo) f32

    # Softmax over the channel (sublane) axis, f32.
    m = jnp.max(z, axis=0, keepdims=True)                            # (1, Ho*Wo)
    e = jnp.exp(z - m)
    s = jnp.sum(e, axis=0, keepdims=True)
    inv = pl.reciprocal(s, approx=True)                              # EUP, one per pixel
    out_ref[0] = (e * inv).astype(out_ref.dtype)


def plain_decoder(x, conv_w, conv_b, img_height, img_width, matmul_dtype=jnp.float32):
    """x: (N, C_in, H, W) float32. conv_w: (C_out, C_in). conv_b: (C_out,).
    Returns {'seg': (N, C_out, img_height, img_width)} (softmax-ed, eval mode)."""
    N, C_in, H, W = x.shape
    C_out = conv_w.shape[0]
    HW = H * W
    HWo = img_height * img_width

    # Precompute the fused (separable -> Kronecker) bilinear resize matrix.
    mh = _bilinear_matrix(img_height, H)          # (Ho, H)
    mw = _bilinear_matrix(img_width, W)           # (Wo, W)
    mt = jnp.asarray(np.kron(mh, mw).T)           # (H*W, Ho*Wo)

    # Lane-dense, flattened-spatial operands.
    x_flat = x.reshape(N, C_in, HW).astype(matmul_dtype)
    w = conv_w.astype(matmul_dtype)
    mt = mt.astype(matmul_dtype)
    b2 = conv_b.reshape(C_out, 1).astype(jnp.float32)

    seg_flat = pl.pallas_call(
        _plain_decoder_kernel,
        out_shape=jax.ShapeDtypeStruct((N, C_out, HWo), jnp.float32),
        grid_spec=pltpu.PrefetchScalarGridSpec(
            num_scalar_prefetch=0,
            grid=(N,),
            in_specs=[
                pl.BlockSpec((1, C_in, HW), lambda n: (n, 0, 0)),   # per-batch input
                pl.BlockSpec((C_out, C_in), lambda n: (0, 0)),      # weight (fetched once)
                pl.BlockSpec((C_out, 1), lambda n: (0, 0)),         # bias   (fetched once)
                pl.BlockSpec((HW, HWo), lambda n: (0, 0)),          # resize (fetched once)
            ],
            out_specs=pl.BlockSpec((1, C_out, HWo), lambda n: (n, 0, 0)),
        ),
        compiler_params=pltpu.CompilerParams(dimension_semantics=("parallel",)),
    )(x_flat, w, b2, mt)

    return {'seg': seg_flat.reshape(N, C_out, img_height, img_width)}


def _reference(x, conv_w, conv_b, img_height, img_width):
    """Pure-JAX reference of the same forward pass (eval mode), separable form."""
    y = jnp.einsum('oc,nchw->nohw', conv_w, x) + conv_b[None, :, None, None]
    mh = jnp.asarray(_bilinear_matrix(img_height, x.shape[2]))
    mw = jnp.asarray(_bilinear_matrix(img_width, x.shape[3]))
    t = jnp.einsum('ih,nchw->nciw', mh, y)
    z = jnp.einsum('jw,nciw->ncij', mw, t)
    return jax.nn.softmax(z, axis=1)


if __name__ == "__main__":
    # cfg: featuremap_out_channel=8, num_classes=4, img_height=img_width=32
    N, C_in, H, W = 2, 8, 16, 16
    C_out, IMG_H, IMG_W = 4, 32, 32

    key = jax.random.PRNGKey(0)
    kx, kw, kb = jax.random.split(key, 3)
    x = jax.random.normal(kx, (N, C_in, H, W), dtype=jnp.float32)
    # Deterministic synthetic parameters for the 1x1 conv (Conv2d(C_in, C_out, 1)).
    conv_w = jax.random.normal(kw, (C_out, C_in), dtype=jnp.float32) * 0.1
    conv_b = jax.random.normal(kb, (C_out,), dtype=jnp.float32) * 0.1

    out = plain_decoder(x, conv_w, conv_b, IMG_H, IMG_W)
    seg = jax.block_until_ready(out['seg'])

    ref = jax.block_until_ready(_reference(x, conv_w, conv_b, IMG_H, IMG_W))
    # Tolerance loosened (1e-4 -> 2e-3) only to cover the EUP approximate
    # reciprocal in the softmax denominator; matmuls/exps are exact f32.
    np.testing.assert_allclose(np.asarray(seg), np.asarray(ref), atol=2e-3, rtol=2e-3)

    print("KERNEL_OK")
</pallas_src>

<mosaic_0001>
module attributes {stable_mosaic.version = 11 : i64} {
  func.func @_plain_decoder_kernel(%arg0: i32, %arg1: memref<1x8x256xf32, #tpu.memory_space<vmem>>, %arg2: memref<4x8xf32, #tpu.memory_space<vmem>>, %arg3: memref<4x1xf32, #tpu.memory_space<vmem>>, %arg4: memref<256x1024xf32, #tpu.memory_space<vmem>>, %arg5: memref<1x4x1024xf32, #tpu.memory_space<vmem>>) attributes {dimension_semantics = [#tpu.dimension_semantics<parallel>], iteration_bounds = array<i64: 2>, scalar_prefetch = 0 : i64, scratch_operands = 0 : i64, tpu.core_type = #tpu.core_type<tc>, window_params = [{transform_indices = @transform_0, window_bounds = array<i64: 1, 8, 256>}, {pipeline_mode = #tpu.pipeline_mode<synchronous>, transform_indices = @transform_1, window_bounds = array<i64: 4, 8>}, {pipeline_mode = #tpu.pipeline_mode<synchronous>, transform_indices = @transform_2, window_bounds = array<i64: 4, 1>}, {pipeline_mode = #tpu.pipeline_mode<synchronous>, transform_indices = @transform_3, window_bounds = array<i64: 256, 1024>}, {transform_indices = @transform_4, window_bounds = array<i64: 1, 4, 1024>}]} {
    %c0 = arith.constant 0 : index
    %c0_0 = arith.constant 0 : index
    %c0_1 = arith.constant 0 : index
    %0 = vector.load %arg1[%c0, %c0_0, %c0_1] : memref<1x8x256xf32, #tpu.memory_space<vmem>>, vector<1x8x256xf32>
    %1 = vector.shape_cast %0 : vector<1x8x256xf32> to vector<8x256xf32>
    %c0_2 = arith.constant 0 : index
    %c0_3 = arith.constant 0 : index
    %2 = vector.load %arg2[%c0_2, %c0_3] : memref<4x8xf32, #tpu.memory_space<vmem>>, vector<4x8xf32>
    %c0_4 = arith.constant 0 : index
    %c0_5 = arith.constant 0 : index
    %3 = vector.load %arg3[%c0_4, %c0_5] : memref<4x1xf32, #tpu.memory_space<vmem>>, vector<4x1xf32>
    %c0_6 = arith.constant 0 : index
    %c0_7 = arith.constant 0 : index
    %4 = vector.load %arg4[%c0_6, %c0_7] : memref<256x1024xf32, #tpu.memory_space<vmem>>, vector<256x1024xf32>
    %cst = arith.constant dense<0.000000e+00> : vector<4x256xf32>
    %5 = tpu.matmul %2, %1, %cst {dimension_numbers = #tpu.dot_dimension_numbers<[1], [0], [0], [1], [0, 0, 1, 1], [], []>} : vector<4x8xf32>, vector<8x256xf32>, vector<4x256xf32> -> vector<4x256xf32>
    %6 = vector.broadcast %3 : vector<4x1xf32> to vector<4x256xf32>
    %7 = arith.addf %5, %6 : vector<4x256xf32>
    %cst_8 = arith.constant dense<0.000000e+00> : vector<4x1024xf32>
    %8 = tpu.matmul %7, %4, %cst_8 {dimension_numbers = #tpu.dot_dimension_numbers<[1], [0], [0], [1], [0, 0, 1, 1], [], []>} : vector<4x256xf32>, vector<256x1024xf32>, vector<4x1024xf32> -> vector<4x1024xf32>
    %cst_9 = arith.constant dense<0xFF800000> : vector<1024xf32>
    %9 = vector.multi_reduction <maximumf>, %8, %cst_9 [0] : vector<4x1024xf32> to vector<1024xf32>
    %10 = vector.shape_cast %9 : vector<1024xf32> to vector<1x1024xf32>
    %11 = vector.broadcast %10 : vector<1x1024xf32> to vector<4x1024xf32>
    %12 = arith.subf %8, %11 : vector<4x1024xf32>
    %13 = math.exp %12 : vector<4x1024xf32>
    %cst_10 = arith.constant dense<0.000000e+00> : vector<1024xf32>
    %14 = vector.multi_reduction <add>, %13, %cst_10 [0] : vector<4x1024xf32> to vector<1024xf32>
    %15 = vector.shape_cast %14 : vector<1024xf32> to vector<1x1024xf32>
    %16 = tpu.reciprocal %15 {approx = true} : vector<1x1024xf32> -> vector<1x1024xf32>
    %17 = vector.broadcast %16 : vector<1x1024xf32> to vector<4x1024xf32>
    %18 = arith.mulf %13, %17 : vector<4x1024xf32>
    %c0_11 = arith.constant 0 : index
    %c0_12 = arith.constant 0 : index
    %c0_13 = arith.constant 0 : index
    %19 = vector.load %arg5[%c0_11, %c0_12, %c0_13] : memref<1x4x1024xf32, #tpu.memory_space<vmem>>, vector<1x4x1024xf32>
    %20 = vector.shape_cast %19 : vector<1x4x1024xf32> to vector<4x1024xf32>
    %21 = vector.shape_cast %18 : vector<4x1024xf32> to vector<1x4x1024xf32>
    tpu.vector_store %arg5[%c0_11, %c0_12, %c0_13], %21 {strides = array<i32>} : memref<1x4x1024xf32, #tpu.memory_space<vmem>>, vector<1x4x1024xf32>,
    return
  }
  func.func @transform_0(%arg0: i32) -> (i32, i32, i32) {
    %c0_i32 = arith.constant 0 : i32
    %c0_i32_0 = arith.constant 0 : i32
    %c0_i32_1 = arith.constant 0 : i32
    return %arg0, %c0_i32, %c0_i32_0 : i32, i32, i32
  }
  func.func @transform_1(%arg0: i32) -> (i32, i32) {
    %c0_i32 = arith.constant 0 : i32
    %c0_i32_0 = arith.constant 0 : i32
    %c0_i32_1 = arith.constant 0 : i32
    return %c0_i32, %c0_i32_0 : i32, i32
  }
  func.func @transform_2(%arg0: i32) -> (i32, i32) {
    %c0_i32 = arith.constant 0 : i32
    %c0_i32_0 = arith.constant 0 : i32
    %c0_i32_1 = arith.constant 0 : i32
    return %c0_i32, %c0_i32_0 : i32, i32
  }
  func.func @transform_3(%arg0: i32) -> (i32, i32) {
    %c0_i32 = arith.constant 0 : i32
    %c0_i32_0 = arith.constant 0 : i32
    %c0_i32_1 = arith.constant 0 : i32
    return %c0_i32, %c0_i32_0 : i32, i32
  }
  func.func @transform_4(%arg0: i32) -> (i32, i32, i32) {
    %c0_i32 = arith.constant 0 : i32
    %c0_i32_0 = arith.constant 0 : i32
    %c0_i32_1 = arith.constant 0 : i32
    return %arg0, %c0_i32, %c0_i32_0 : i32, i32, i32
  }
}

</mosaic_0001>

<llo_original>
// kernel: tpu_custom_call.1
$region0: #{tpu_custom_call.1}
  #allocation0 [shape = 'u32[]', space=smem, size = 0x4, offset = 0x4, fixed_abs, tag = 'smem constant byte address 0x4 - core index']
  #allocation1 [shape = 'u32[144,128]{1,0:T(1,128)}', space=vmem, size = 0x12000, scoped, tag = 'internal scratch']
  %s0 = inlined_call_operand.hbm [shape: f32[2,8,256], index: 0, kind: input, shape index: {}]
  %s1 = inlined_call_operand.vmem [shape: f32[4,8], index: 1, kind: input, shape index: {}]
  %s2 = inlined_call_operand.vmem [shape: f32[4,1], index: 2, kind: input, shape index: {}]
  %s3 = inlined_call_operand.hbm [shape: f32[256,1024], index: 3, kind: input, shape index: {}]
  %s4 = inlined_call_operand.hbm [shape: f32[2,4,1024], index: 4, kind: output, shape index: {}]
  %s5 = sld [smem:[#allocation0]]
  $region57: #{tpu_custom_call.1} parent=0
    _
  %s7 = ssub.s32 1, %s5
  %s8 = scalar_select 0, %s7, %s5
  $region1: #{tpu_custom_call.1} parent=0
    #allocation2 [shape = 'u8[16384]{0}', space=vmem, size = 0x4000, scoped, tag = 'input window, operand 0']
    #allocation3 [shape = 's32[2]{0}', space=sflag, size = 0x8, scoped, tag = 'scoped memory for tpu_custom_call.1']
    #allocation4 [shape = 's32[2]{0}', space=sflag, size = 0x8, scoped, tag = 'scoped memory for tpu_custom_call.1']
    #allocation5 [shape = 'u8[1048576]{0}', space=vmem, size = 0x100000, scoped, tag = 'input window, operand 3, single buffered']
    #allocation6 [shape = 's32[1]{0}', space=sflag, size = 0x4, scoped, tag = 'scoped memory for tpu_custom_call.1']
    #allocation7 [shape = 'u8[32768]{0}', space=vmem, size = 0x8000, scoped, tag = 'output window, operand 0']
    %9 = vsyncpa [#allocation3], 0
    %s10 = scalar_lea.sflag [#allocation3], 1
    %11 = vsyncpa %s10, 0
    %12 = vsyncpa [#allocation6], 0
    %13 = vsyncpa [#allocation4], 0
    %s14 = scalar_lea.sflag [#allocation4], 1
    %15 = vsyncpa %s14, 0
    loop: start=0, step=1, limit=4
    $region2: #{tpu_custom_call.1} parent=1 // loop_pre_header
      _
    $region3: #{tpu_custom_call.1} parent=1 // loop_header
      %s17 = sphi 0, %s21
      %p18 = scmp.ge.s32.totalorder %s17, 4
      %s27 = sphi 0, %s29
      %s30 = sphi 0, %s27
      %s31 = sphi 0, %s30
      %s47 = sphi 0, %s31
      %s51 = sphi 0, %s51
      %s53 = sphi 0, %s51
      %s54 = sphi 0, %s53
      %s68 = sphi 0, %s54
      %s72 = sphi 0, %s72
      %s74 = sphi 0, %s72
      %s75 = sphi 0, %s74
      %s89 = sphi 0, %s75
      %s93 = sphi 0, %s93
      %s95 = sphi 0, %s93
      %s96 = sphi 0, %s95
      %s110 = sphi 0, %s96
      %s116 = sphi 0, %s118
      %s119 = sphi 0, %s116
      %s120 = sphi 0, %s119
      %s136 = sphi 0, %s120
    $region4: #{tpu_custom_call.1} parent=1 // loop_header_branch
      %20 = sbr.rel (%p18) target = $region8
    $region5: #{tpu_custom_call.1} parent=1 // loop_body
      %s22 = ssub.s32 %s17, 1
      %s23 = ssub.s32 %s17, 2
      %s24 = sadd.s32 %s17, 1
      %s25 = ssub.s32 %s17, %s24
      %p26 = scmp.eq.s32.totalorder %s25, 0
      %s28 = sadd.s32 %s27, 1
      %s29 = scalar_select %p26, %s27, %s28
      %p32 = pneg %p26
      %p33 = scmp.eq.s32.totalorder %s17, 1
      %p34 = por %p32, %p33
      %p35 = scmp.ne.s32.totalorder %s27, %s30
      %p36 = scmp.eq.s32.totalorder %s17, 0
      %p37 = por %p35, %p36
      %p38 = scmp.ne.s32.totalorder %s27, %s30
      %p39 = scmp.eq.s32.totalorder %s22, 1
      %p40 = por %p38, %p39
      %p41 = scmp.ne.s32.totalorder %s30, %s31
      %p42 = scmp.eq.s32.totalorder %s22, 0
      %p43 = por %p41, %p42
      %p44 = scmp.ne.s32.totalorder %s30, %s31
      %p45 = scmp.eq.s32.totalorder %s23, 1
      %p46 = por %p44, %p45
      %p48 = scmp.ne.s32.totalorder %s31, %s47
      %p49 = scmp.eq.s32.totalorder %s23, 0
      %p50 = por %p48, %p49
      %s52 = sadd.s32 %s51, 1
      %p55 = scmp.eq.s32.totalorder %s17, 1
      %p56 = scmp.ne.s32.totalorder %s51, %s53
      %p57 = scmp.eq.s32.totalorder %s17, 0
      %p58 = por %p56, %p57
      %p59 = scmp.ne.s32.totalorder %s51, %s53
      %p60 = scmp.eq.s32.totalorder %s22, 1
      %p61 = por %p59, %p60
      %p62 = scmp.ne.s32.totalorder %s53, %s54
      %p63 = scmp.eq.s32.totalorder %s22, 0
      %p64 = por %p62, %p63
      %p65 = scmp.ne.s32.totalorder %s53, %s54
      %p66 = scmp.eq.s32.totalorder %s23, 1
      %p67 = por %p65, %p66
      %p69 = scmp.ne.s32.totalorder %s54, %s68
      %p70 = scmp.eq.s32.totalorder %s23, 0
      %p71 = por %p69, %p70
      %s73 = sadd.s32 %s72, 1
      %p76 = scmp.eq.s32.totalorder %s17, 1
      %p77 = scmp.ne.s32.totalorder %s72, %s74
      %p78 = scmp.eq.s32.totalorder %s17, 0
      %p79 = por %p77, %p78
      %p80 = scmp.ne.s32.totalorder %s72, %s74
      %p81 = scmp.eq.s32.totalorder %s22, 1
      %p82 = por %p80, %p81
      %p83 = scmp.ne.s32.totalorder %s74, %s75
      %p84 = scmp.eq.s32.totalorder %s22, 0
      %p85 = por %p83, %p84
      %p86 = scmp.ne.s32.totalorder %s74, %s75
      %p87 = scmp.eq.s32.totalorder %s23, 1
      %p88 = por %p86, %p87
      %p90 = scmp.ne.s32.totalorder %s75, %s89
      %p91 = scmp.eq.s32.totalorder %s23, 0
      %p92 = por %p90, %p91
      %s94 = sadd.s32 %s93, 1
      %p97 = scmp.eq.s32.totalorder %s17, 1
      %p98 = scmp.ne.s32.totalorder %s93, %s95
      %p99 = scmp.eq.s32.totalorder %s17, 0
      %p100 = por %p98, %p99
      %p101 = scmp.ne.s32.totalorder %s93, %s95
      %p102 = scmp.eq.s32.totalorder %s22, 1
      %p103 = por %p101, %p102
      %p104 = scmp.ne.s32.totalorder %s95, %s96
      %p105 = scmp.eq.s32.totalorder %s22, 0
      %p106 = por %p104, %p105
      %p107 = scmp.ne.s32.totalorder %s95, %s96
      %p108 = scmp.eq.s32.totalorder %s23, 1
      %p109 = por %p107, %p108
      %p111 = scmp.ne.s32.totalorder %s96, %s110
      %p112 = scmp.eq.s32.totalorder %s23, 0
      %p113 = por %p111, %p112
      %s114 = ssub.s32 %s17, %s24
      %p115 = scmp.eq.s32.totalorder %s114, 0
      %s117 = sadd.s32 %s116, 1
      %s118 = scalar_select %p115, %s116, %s117
      %p121 = pneg %p115
      %p122 = scmp.eq.s32.totalorder %s17, 1
      %p123 = por %p121, %p122
      %p124 = scmp.ne.s32.totalorder %s116, %s119
      %p125 = scmp.eq.s32.totalorder %s17, 0
      %p126 = por %p124, %p125
      %p127 = scmp.ne.s32.totalorder %s116, %s119
      %p128 = scmp.eq.s32.totalorder %s22, 1
      %p129 = por %p127, %p128
      %p130 = scmp.ne.s32.totalorder %s119, %s120
      %p131 = scmp.eq.s32.totalorder %s22, 0
      %p132 = por %p130, %p131
      %p133 = scmp.ne.s32.totalorder %s119, %s120
      %p134 = scmp.eq.s32.totalorder %s23, 1
      %p135 = por %p133, %p134
      %p137 = scmp.ne.s32.totalorder %s120, %s136
      %p138 = scmp.eq.s32.totalorder %s23, 0
      %p139 = por %p137, %p138
      %p140 = scmp.le.s32.totalorder 1, %s17
      %p141 = scmp.lt.s32.totalorder %s17, 3
      %p142 = pnand %p140, %p141
      %p143 = pneg %p142
      // Predicated region
      $region9: #{tpu_custom_call.1} parent=5 // pred_check
        _
      $region10: #{tpu_custom_call.1} parent=5 // pred_check_branch
        %145 = sbr.rel (%p142) target = $region12
      $region11: #{tpu_custom_call.1} parent=5 // pred_region
        %s146 = ssub.s32 %s17, 1
        // Predicated region
        $region13: #{tpu_custom_call.1} parent=11 // pred_check
          %p147 = pneg %p64
        $region14: #{tpu_custom_call.1} parent=11 // pred_check_branch
          %149 = sbr.rel (%p147) target = $region16
        $region15: #{tpu_custom_call.1} parent=11 // pred_region
          _
        $region16: #{tpu_custom_call.1} parent=11 // pred_fallthru
          _
        // Predicated region
        $region17: #{tpu_custom_call.1} parent=11 // pred_check
          %p150 = pneg %p85
        $region18: #{tpu_custom_call.1} parent=11 // pred_check_branch
          %152 = sbr.rel (%p150) target = $region20
        $region19: #{tpu_custom_call.1} parent=11 // pred_region
          _
        $region20: #{tpu_custom_call.1} parent=11 // pred_fallthru
          _
        // Predicated region
        $region21: #{tpu_custom_call.1} parent=11 // pred_check
          %p153 = pneg %p106
        $region22: #{tpu_custom_call.1} parent=11 // pred_check_branch
          %155 = sbr.rel (%p153) target = $region24
        $region23: #{tpu_custom_call.1} parent=11 // pred_region
          %s157 = ssub.s32 32768, 32768
          %158 = vsyncadd [#allocation6], %s157
          %s159 = sshll.u32 [#allocation5], 4
          %s160 = int_to_ptr.vmem [resolvable:$true] %s159
          %165 = dma.hbm_to_vmem [thread:$0]  %s3, 32768, %s160, [#allocation6], 1024, 1024, 64
        $region24: #{tpu_custom_call.1} parent=11 // pred_fallthru
          _
      $region12: #{tpu_custom_call.1} parent=5 // pred_fallthru
        _
      %p166 = scmp.lt.s32.totalorder %s17, 2
      // Predicated region
      $region25: #{tpu_custom_call.1} parent=5 // pred_check
        %p167 = pneg %p166
      $region26: #{tpu_custom_call.1} parent=5 // pred_check_branch
        %169 = sbr.rel (%p167) target = $region28
      $region27: #{tpu_custom_call.1} parent=5 // pred_region
        // Predicated region
        $region29: #{tpu_custom_call.1} parent=27 // pred_check
          %p170 = pneg %p37
        $region30: #{tpu_custom_call.1} parent=27 // pred_check_branch
          %172 = sbr.rel (%p170) target = $region32
        $region31: #{tpu_custom_call.1} parent=27 // pred_region
          %s173 = sand.u32 %s27, 1
          %s174 = scalar_lea.sflag [#allocation3], %s173
          %s175 = sand.u32 %s27, 1
          %s176 = smul.addr %s175, 16
          %s177 = scalar_lea.vmem [#allocation2], %s176
          %s179 = ssub.s32 256, 256
          %180 = vsyncadd %s174, %s179
          %s181 = smul.addr %s17, 2
          %s182 = smul.addr %s181, 128
          %s183 = scalar_lea.hbm %s0, %s182
          %s185 = sshll.u32 %s177, 4
          %s186 = int_to_ptr.vmem [resolvable:$true] %s185
          %188 = dma.hbm_to_vmem [thread:$0]  %s183, 256, %s186, %s174
        $region32: #{tpu_custom_call.1} parent=27 // pred_fallthru
          _
      $region28: #{tpu_custom_call.1} parent=5 // pred_fallthru
        _
      %p189 = scmp.le.s32.totalorder 1, %s17
      %p190 = scmp.lt.s32.totalorder %s17, 3
      %p191 = pnand %p189, %p190
      %p192 = pneg %p191
      // Predicated region
      $region33: #{tpu_custom_call.1} parent=5 // pred_check
        _
      $region34: #{tpu_custom_call.1} parent=5 // pred_check_branch
        %194 = sbr.rel (%p191) target = $region36
      $region35: #{tpu_custom_call.1} parent=5 // pred_region
        %s195 = ssub.s32 %s17, 1
        %s196 = sand.u32 %s30, 1
        %s197 = scalar_lea.sflag [#allocation3], %s196
        %s198 = sand.u32 %s30, 1
        %s199 = smul.addr %s198, 16
        %s200 = scalar_lea.vmem [#allocation2], %s199
        // Predicated region
        $region37: #{tpu_custom_call.1} parent=35 // pred_check
          %p201 = pneg %p43
        $region38: #{tpu_custom_call.1} parent=35 // pred_check_branch
          %203 = sbr.rel (%p201) target = $region40
        $region39: #{tpu_custom_call.1} parent=35 // pred_region
          %204 = dma.done %s197, 256
        $region40: #{tpu_custom_call.1} parent=35 // pred_fallthru
          _
        // Predicated region
        $region41: #{tpu_custom_call.1} parent=35 // pred_check
          %p205 = pneg %p106
        $region42: #{tpu_custom_call.1} parent=35 // pred_check_branch
          %207 = sbr.rel (%p205) target = $region44
        $region43: #{tpu_custom_call.1} parent=35 // pred_region
          %208 = dma.done [#allocation6], 32768
        $region44: #{tpu_custom_call.1} parent=35 // pred_fallthru
          _
        %s209 = sand.u32 %s30, 1
        %s210 = scalar_lea.sflag [#allocation3], %s209
        %s211 = sand.u32 %s30, 1
        %s212 = smul.addr %s211, 16
        %s213 = scalar_lea.vmem [#allocation2], %s212
        %p214 = pneg %p43
        %p215 = pneg %p40
        %p216 = pneg %p64
        %p217 = pneg %p61
        %p218 = pneg %p85
        %p219 = pneg %p82
        %p220 = pneg %p106
        %p221 = pneg %p103
        %p222 = pneg %p132
        %p223 = pneg %p129
        %s224 = sand.u32 %s119, 1
        %s225 = scalar_lea.sflag [#allocation4], %s224
        %s226 = sand.u32 %s119, 1
        %s227 = smul.addr %s226, 32
        %s228 = scalar_lea.vmem [#allocation7], %s227
        %v229 = vld [vmem:[%s200] sm:$0xff]
        %v230 = vld [vmem:[%s200 + $0x8] sm:$0xff]
        %v231 = vld [vmem:[%s1] sm:$0xf]
        %v232 = vld [vmem:[%s2] sm:$0xf]
        %v233 = vld [vmem:[#allocation5] sm:$0xff]
        %v234 = vld [vmem:[#allocation5 + $0x8] sm:$0xff]
        %v235 = vld [vmem:[#allocation5 + $0x10] sm:$0xff]
        %v236 = vld [vmem:[#allocation5 + $0x18] sm:$0xff]
        %v237 = vld [vmem:[#allocation5 + $0x20] sm:$0xff]
        %v238 = vld [vmem:[#allocation5 + $0x28] sm:$0xff]
        %v239 = vld [vmem:[#allocation5 + $0x30] sm:$0xff]
        %v240 = vld [vmem:[#allocation5 + $0x38] sm:$0xff]
        %v241 = vld [vmem:[#allocation5 + $0x40] sm:$0xff]
        %v242 = vld [vmem:[#allocation5 + $0x48] sm:$0xff]
        %v243 = vld [vmem:[#allocation5 + $0x50] sm:$0xff]
        %v244 = vld [vmem:[#allocation5 + $0x58] sm:$0xff]
        %v245 = vld [vmem:[#allocation5 + $0x60] sm:$0xff]
        %v246 = vld [vmem:[#allocation5 + $0x68] sm:$0xff]
        %v247 = vld [vmem:[#allocation5 + $0x70] sm:$0xff]
        %v248 = vld [vmem:[#allocation5 + $0x78] sm:$0xff]
        %v249 = vld [vmem:[#allocation5 + $0x80] sm:$0xff]
        %v250 = vld [vmem:[#allocation5 + $0x88] sm:$0xff]
        %v251 = vld [vmem:[#allocation5 + $0x90] sm:$0xff]
        %v252 = vld [vmem:[#allocation5 + $0x98] sm:$0xff]
        %v253 = vld [vmem:[#allocation5 + $0xa0] sm:$0xff]
        %v254 = vld [vmem:[#allocation5 + $0xa8] sm:$0xff]
        %v255 = vld [vmem:[#allocation5 + $0xb0] sm:$0xff]
        %v256 = vld [vmem:[#allocation5 + $0xb8] sm:$0xff]
        %v257 = vld [vmem:[#allocation5 + $0xc0] sm:$0xff]
        %v258 = vld [vmem:[#allocation5 + $0xc8] sm:$0xff]
        %v259 = vld [vmem:[#allocation5 + $0xd0] sm:$0xff]
        %v260 = vld [vmem:[#allocation5 + $0xd8] sm:$0xff]
        %v261 = vld [vmem:[#allocation5 + $0xe0] sm:$0xff]
        %v262 = vld [vmem:[#allocation5 + $0xe8] sm:$0xff]
        %v263 = vld [vmem:[#allocation5 + $0xf0] sm:$0xff]
        %v264 = vld [vmem:[#allocation5 + $0xf8] sm:$0xff]
        %v265 = vld [vmem:[#allocation5 + $0x100] sm:$0xff]
        %v266 = vld [vmem:[#allocation5 + $0x108] sm:$0xff]
        %v267 = vld [vmem:[#allocation5 + $0x110] sm:$0xff]
        %v268 = vld [vmem:[#allocation5 + $0x118] sm:$0xff]
        %v269 = vld [vmem:[#allocation5 + $0x120] sm:$0xff]
        %v270 = vld [vmem:[#allocation5 + $0x128] sm:$0xff]
        %v271 = vld [vmem:[#allocation5 + $0x130] sm:$0xff]
        %v272 = vld [vmem:[#allocation5 + $0x138] sm:$0xff]
        %v273 = vld [vmem:[#allocation5 + $0x140] sm:$0xff]
        %v274 = vld [vmem:[#allocation5 + $0x148] sm:$0xff]
        %v275 = vld [vmem:[#allocation5 + $0x150] sm:$0xff]
        %v276 = vld [vmem:[#allocation5 + $0x158] sm:$0xff]
        %v277 = vld [vmem:[#allocation5 + $0x160] sm:$0xff]
        %v278 = vld [vmem:[#allocation5 + $0x168] sm:$0xff]
        %v279 = vld [vmem:[#allocation5 + $0x170] sm:$0xff]
        %v280 = vld [vmem:[#allocation5 + $0x178] sm:$0xff]
        %v281 = vld [vmem:[#allocation5 + $0x180] sm:$0xff]
        %v282 = vld [vmem:[#allocation5 + $0x188] sm:$0xff]
        %v283 = vld [vmem:[#allocation5 + $0x190] sm:$0xff]
        %v284 = vld [vmem:[#allocation5 + $0x198] sm:$0xff]
        %v285 = vld [vmem:[#allocation5 + $0x1a0] sm:$0xff]
        %v286 = vld [vmem:[#allocation5 + $0x1a8] sm:$0xff]
        %v287 = vld [vmem:[#allocation5 + $0x1b0] sm:$0xff]
        %v288 = vld [vmem:[#allocation5 + $0x1b8] sm:$0xff]
        %v289 = vld [vmem:[#allocation5 + $0x1c0] sm:$0xff]
        %v290 = vld [vmem:[#allocation5 + $0x1c8] sm:$0xff]
        %v291 = vld [vmem:[#allocation5 + $0x1d0] sm:$0xff]
        %v292 = vld [vmem:[#allocation5 + $0x1d8] sm:$0xff]
        %v293 = vld [vmem:[#allocation5 + $0x1e0] sm:$0xff]
        %v294 = vld [vmem:[#allocation5 + $0x1e8] sm:$0xff]
        %v295 = vld [vmem:[#allocation5 + $0x1f0] sm:$0xff]
        %v296 = vld [vmem:[#allocation5 + $0x1f8] sm:$0xff]
        %v297 = vld [vmem:[#allocation5 + $0x200] sm:$0xff]
        %v298 = vld [vmem:[#allocation5 + $0x208] sm:$0xff]
        %v299 = vld [vmem:[#allocation5 + $0x210] sm:$0xff]
        %v300 = vld [vmem:[#allocation5 + $0x218] sm:$0xff]
        %v301 = vld [vmem:[#allocation5 + $0x220] sm:$0xff]
        %v302 = vld [vmem:[#allocation5 + $0x228] sm:$0xff]
        %v303 = vld [vmem:[#allocation5 + $0x230] sm:$0xff]
        %v304 = vld [vmem:[#allocation5 + $0x238] sm:$0xff]
        %v305 = vld [vmem:[#allocation5 + $0x240] sm:$0xff]
        %v306 = vld [vmem:[#allocation5 + $0x248] sm:$0xff]
        %v307 = vld [vmem:[#allocation5 + $0x250] sm:$0xff]
        %v308 = vld [vmem:[#allocation5 + $0x258] sm:$0xff]
        %v309 = vld [vmem:[#allocation5 + $0x260] sm:$0xff]
        %v310 = vld [vmem:[#allocation5 + $0x268] sm:$0xff]
        %v311 = vld [vmem:[#allocation5 + $0x270] sm:$0xff]
        %v312 = vld [vmem:[#allocation5 + $0x278] sm:$0xff]
        %v313 = vld [vmem:[#allocation5 + $0x280] sm:$0xff]
        %v314 = vld [vmem:[#allocation5 + $0x288] sm:$0xff]
        %v315 = vld [vmem:[#allocation5 + $0x290] sm:$0xff]
        %v316 = vld [vmem:[#allocation5 + $0x298] sm:$0xff]
        %v317 = vld [vmem:[#allocation5 + $0x2a0] sm:$0xff]
        %v318 = vld [vmem:[#allocation5 + $0x2a8] sm:$0xff]
        %v319 = vld [vmem:[#allocation5 + $0x2b0] sm:$0xff]
        %v320 = vld [vmem:[#allocation5 + $0x2b8] sm:$0xff]
        %v321 = vld [vmem:[#allocation5 + $0x2c0] sm:$0xff]
        %v322 = vld [vmem:[#allocation5 + $0x2c8] sm:$0xff]
        %v323 = vld [vmem:[#allocation5 + $0x2d0] sm:$0xff]
        %v324 = vld [vmem:[#allocation5 + $0x2d8] sm:$0xff]
        %v325 = vld [vmem:[#allocation5 + $0x2e0] sm:$0xff]
        %v326 = vld [vmem:[#allocation5 + $0x2e8] sm:$0xff]
        %v327 = vld [vmem:[#allocation5 + $0x2f0] sm:$0xff]
        %v328 = vld [vmem:[#allocation5 + $0x2f8] sm:$0xff]
        %v329 = vld [vmem:[#allocation5 + $0x300] sm:$0xff]
        %v330 = vld [vmem:[#allocation5 + $0x308] sm:$0xff]
        %v331 = vld [vmem:[#allocation5 + $0x310] sm:$0xff]
        %v332 = vld [vmem:[#allocation5 + $0x318] sm:$0xff]
        %v333 = vld [vmem:[#allocation5 + $0x320] sm:$0xff]
        %v334 = vld [vmem:[#allocation5 + $0x328] sm:$0xff]
        %v335 = vld [vmem:[#allocation5 + $0x330] sm:$0xff]
        %v336 = vld [vmem:[#allocation5 + $0x338] sm:$0xff]
        %v337 = vld [vmem:[#allocation5 + $0x340] sm:$0xff]
        %v338 = vld [vmem:[#allocation5 + $0x348] sm:$0xff]
        %v339 = vld [vmem:[#allocation5 + $0x350] sm:$0xff]
        %v340 = vld [vmem:[#allocation5 + $0x358] sm:$0xff]
        %v341 = vld [vmem:[#allocation5 + $0x360] sm:$0xff]
        %v342 = vld [vmem:[#allocation5 + $0x368] sm:$0xff]
        %v343 = vld [vmem:[#allocation5 + $0x370] sm:$0xff]
        %v344 = vld [vmem:[#allocation5 + $0x378] sm:$0xff]
        %v345 = vld [vmem:[#allocation5 + $0x380] sm:$0xff]
        %v346 = vld [vmem:[#allocation5 + $0x388] sm:$0xff]
        %v347 = vld [vmem:[#allocation5 + $0x390] sm:$0xff]
        %v348 = vld [vmem:[#allocation5 + $0x398] sm:$0xff]
        %v349 = vld [vmem:[#allocation5 + $0x3a0] sm:$0xff]
        %v350 = vld [vmem:[#allocation5 + $0x3a8] sm:$0xff]
        %v351 = vld [vmem:[#allocation5 + $0x3b0] sm:$0xff]
        %v352 = vld [vmem:[#allocation5 + $0x3b8] sm:$0xff]
        %v353 = vld [vmem:[#allocation5 + $0x3c0] sm:$0xff]
        %v354 = vld [vmem:[#allocation5 + $0x3c8] sm:$0xff]
        %v355 = vld [vmem:[#allocation5 + $0x3d0] sm:$0xff]
        %v356 = vld [vmem:[#allocation5 + $0x3d8] sm:$0xff]
        %v357 = vld [vmem:[#allocation5 + $0x3e0] sm:$0xff]
        %v358 = vld [vmem:[#allocation5 + $0x3e8] sm:$0xff]
        %v359 = vld [vmem:[#allocation5 + $0x3f0] sm:$0xff]
        %v360 = vld [vmem:[#allocation5 + $0x3f8] sm:$0xff]
        %v361 = vld [vmem:[#allocation5 + $0x400] sm:$0xff]
        %v362 = vld [vmem:[#allocation5 + $0x408] sm:$0xff]
        %v363 = vld [vmem:[#allocation5 + $0x410] sm:$0xff]
        %v364 = vld [vmem:[#allocation5 + $0x418] sm:$0xff]
        %v365 = vld [vmem:[#allocation5 + $0x420] sm:$0xff]
        %v366 = vld [vmem:[#allocation5 + $0x428] sm:$0xff]
        %v367 = vld [vmem:[#allocation5 + $0x430] sm:$0xff]
        %v368 = vld [vmem:[#allocation5 + $0x438] sm:$0xff]
        %v369 = vld [vmem:[#allocation5 + $0x440] sm:$0xff]
        %v370 = vld [vmem:[#allocation5 + $0x448] sm:$0xff]
        %v371 = vld [vmem:[#allocation5 + $0x450] sm:$0xff]
        %v372 = vld [vmem:[#allocation5 + $0x458] sm:$0xff]
        %v373 = vld [vmem:[#allocation5 + $0x460] sm:$0xff]
        %v374 = vld [vmem:[#allocation5 + $0x468] sm:$0xff]
        %v375 = vld [vmem:[#allocation5 + $0x470] sm:$0xff]
        %v376 = vld [vmem:[#allocation5 + $0x478] sm:$0xff]
        %v377 = vld [vmem:[#allocation5 + $0x480] sm:$0xff]
        %v378 = vld [vmem:[#allocation5 + $0x488] sm:$0xff]
        %v379 = vld [vmem:[#allocation5 + $0x490] sm:$0xff]
        %v380 = vld [vmem:[#allocation5 + $0x498] sm:$0xff]
        %v381 = vld [vmem:[#allocation5 + $0x4a0] sm:$0xff]
        %v382 = vld [vmem:[#allocation5 + $0x4a8] sm:$0xff]
        %v383 = vld [vmem:[#allocation5 + $0x4b0] sm:$0xff]
        %v384 = vld [vmem:[#allocation5 + $0x4b8] sm:$0xff]
        %v385 = vld [vmem:[#allocation5 + $0x4c0] sm:$0xff]
        %v386 = vld [vmem:[#allocation5 + $0x4c8] sm:$0xff]
        %v387 = vld [vmem:[#allocation5 + $0x4d0] sm:$0xff]
        %v388 = vld [vmem:[#allocation5 + $0x4d8] sm:$0xff]
        %v389 = vld [vmem:[#allocation5 + $0x4e0] sm:$0xff]
        %v390 = vld [vmem:[#allocation5 + $0x4e8] sm:$0xff]
        %v391 = vld [vmem:[#allocation5 + $0x4f0] sm:$0xff]
        %v392 = vld [vmem:[#allocation5 + $0x4f8] sm:$0xff]
        %v393 = vld [vmem:[#allocation5 + $0x500] sm:$0xff]
        %v394 = vld [vmem:[#allocation5 + $0x508] sm:$0xff]
        %v395 = vld [vmem:[#allocation5 + $0x510] sm:$0xff]
        %v396 = vld [vmem:[#allocation5 + $0x518] sm:$0xff]
        %v397 = vld [vmem:[#allocation5 + $0x520] sm:$0xff]
        %v398 = vld [vmem:[#allocation5 + $0x528] sm:$0xff]
        %v399 = vld [vmem:[#allocation5 + $0x530] sm:$0xff]
        %v400 = vld [vmem:[#allocation5 + $0x538] sm:$0xff]
        %v401 = vld [vmem:[#allocation5 + $0x540] sm:$0xff]
        %v402 = vld [vmem:[#allocation5 + $0x548] sm:$0xff]
        %v403 = vld [vmem:[#allocation5 + $0x550] sm:$0xff]
        %v404 = vld [vmem:[#allocation5 + $0x558] sm:$0xff]
        %v405 = vld [vmem:[#allocation5 + $0x560] sm:$0xff]
        %v406 = vld [vmem:[#allocation5 + $0x568] sm:$0xff]
        %v407 = vld [vmem:[#allocation5 + $0x570] sm:$0xff]
        %v408 = vld [vmem:[#allocation5 + $0x578] sm:$0xff]
        %v409 = vld [vmem:[#allocation5 + $0x580] sm:$0xff]
        %v410 = vld [vmem:[#allocation5 + $0x588] sm:$0xff]
        %v411 = vld [vmem:[#allocation5 + $0x590] sm:$0xff]
        %v412 = vld [vmem:[#allocation5 + $0x598] sm:$0xff]
        %v413 = vld [vmem:[#allocation5 + $0x5a0] sm:$0xff]
        %v414 = vld [vmem:[#allocation5 + $0x5a8] sm:$0xff]
        %v415 = vld [vmem:[#allocation5 + $0x5b0] sm:$0xff]
        %v416 = vld [vmem:[#allocation5 + $0x5b8] sm:$0xff]
        %v417 = vld [vmem:[#allocation5 + $0x5c0] sm:$0xff]
        %v418 = vld [vmem:[#allocation5 + $0x5c8] sm:$0xff]
        %v419 = vld [vmem:[#allocation5 + $0x5d0] sm:$0xff]
        %v420 = vld [vmem:[#allocation5 + $0x5d8] sm:$0xff]
        %v421 = vld [vmem:[#allocation5 + $0x5e0] sm:$0xff]
        %v422 = vld [vmem:[#allocation5 + $0x5e8] sm:$0xff]
        %v423 = vld [vmem:[#allocation5 + $0x5f0] sm:$0xff]
        %v424 = vld [vmem:[#allocation5 + $0x5f8] sm:$0xff]
        %v425 = vld [vmem:[#allocation5 + $0x600] sm:$0xff]
        %v426 = vld [vmem:[#allocation5 + $0x608] sm:$0xff]
        %v427 = vld [vmem:[#allocation5 + $0x610] sm:$0xff]
        %v428 = vld [vmem:[#allocation5 + $0x618] sm:$0xff]
        %v429 = vld [vmem:[#allocation5 + $0x620] sm:$0xff]
        %v430 = vld [vmem:[#allocation5 + $0x628] sm:$0xff]
        %v431 = vld [vmem:[#allocation5 + $0x630] sm:$0xff]
        %v432 = vld [vmem:[#allocation5 + $0x638] sm:$0xff]
        %v433 = vld [vmem:[#allocation5 + $0x640] sm:$0xff]
        %v434 = vld [vmem:[#allocation5 + $0x648] sm:$0xff]
        %v435 = vld [vmem:[#allocation5 + $0x650] sm:$0xff]
        %v436 = vld [vmem:[#allocation5 + $0x658] sm:$0xff]
        %v437 = vld [vmem:[#allocation5 + $0x660] sm:$0xff]
        %v438 = vld [vmem:[#allocation5 + $0x668] sm:$0xff]
        %v439 = vld [vmem:[#allocation5 + $0x670] sm:$0xff]
        %v440 = vld [vmem:[#allocation5 + $0x678] sm:$0xff]
        %v441 = vld [vmem:[#allocation5 + $0x680] sm:$0xff]
        %v442 = vld [vmem:[#allocation5 + $0x688] sm:$0xff]
        %v443 = vld [vmem:[#allocation5 + $0x690] sm:$0xff]
        %v444 = vld [vmem:[#allocation5 + $0x698] sm:$0xff]
        %v445 = vld [vmem:[#allocation5 + $0x6a0] sm:$0xff]
        %v446 = vld [vmem:[#allocation5 + $0x6a8] sm:$0xff]
        %v447 = vld [vmem:[#allocation5 + $0x6b0] sm:$0xff]
        %v448 = vld [vmem:[#allocation5 + $0x6b8] sm:$0xff]
        %v449 = vld [vmem:[#allocation5 + $0x6c0] sm:$0xff]
        %v450 = vld [vmem:[#allocation5 + $0x6c8] sm:$0xff]
        %v451 = vld [vmem:[#allocation5 + $0x6d0] sm:$0xff]
        %v452 = vld [vmem:[#allocation5 + $0x6d8] sm:$0xff]
        %v453 = vld [vmem:[#allocation5 + $0x6e0] sm:$0xff]
        %v454 = vld [vmem:[#allocation5 + $0x6e8] sm:$0xff]
        %v455 = vld [vmem:[#allocation5 + $0x6f0] sm:$0xff]
        %v456 = vld [vmem:[#allocation5 + $0x6f8] sm:$0xff]
        %v457 = vld [vmem:[#allocation5 + $0x700] sm:$0xff]
        %v458 = vld [vmem:[#allocation5 + $0x708] sm:$0xff]
        %v459 = vld [vmem:[#allocation5 + $0x710] sm:$0xff]
        %v460 = vld [vmem:[#allocation5 + $0x718] sm:$0xff]
        %v461 = vld [vmem:[#allocation5 + $0x720] sm:$0xff]
        %v462 = vld [vmem:[#allocation5 + $0x728] sm:$0xff]
        %v463 = vld [vmem:[#allocation5 + $0x730] sm:$0xff]
        %v464 = vld [vmem:[#allocation5 + $0x738] sm:$0xff]
        %v465 = vld [vmem:[#allocation5 + $0x740] sm:$0xff]
        %v466 = vld [vmem:[#allocation5 + $0x748] sm:$0xff]
        %v467 = vld [vmem:[#allocation5 + $0x750] sm:$0xff]
        %v468 = vld [vmem:[#allocation5 + $0x758] sm:$0xff]
        %v469 = vld [vmem:[#allocation5 + $0x760] sm:$0xff]
        %v470 = vld [vmem:[#allocation5 + $0x768] sm:$0xff]
        %v471 = vld [vmem:[#allocation5 + $0x770] sm:$0xff]
        %v472 = vld [vmem:[#allocation5 + $0x778] sm:$0xff]
        %v473 = vld [vmem:[#allocation5 + $0x780] sm:$0xff]
        %v474 = vld [vmem:[#allocation5 + $0x788] sm:$0xff]
        %v475 = vld [vmem:[#allocation5 + $0x790] sm:$0xff]
        %v476 = vld [vmem:[#allocation5 + $0x798] sm:$0xff]
        %v477 = vld [vmem:[#allocation5 + $0x7a0] sm:$0xff]
        %v478 = vld [vmem:[#allocation5 + $0x7a8] sm:$0xff]
        %v479 = vld [vmem:[#allocation5 + $0x7b0] sm:$0xff]
        %v480 = vld [vmem:[#allocation5 + $0x7b8] sm:$0xff]
        %v481 = vld [vmem:[#allocation5 + $0x7c0] sm:$0xff]
        %v482 = vld [vmem:[#allocation5 + $0x7c8] sm:$0xff]
        %v483 = vld [vmem:[#allocation5 + $0x7d0] sm:$0xff]
        %v484 = vld [vmem:[#allocation5 + $0x7d8] sm:$0xff]
        %v485 = vld [vmem:[#allocation5 + $0x7e0] sm:$0xff]
        %v486 = vld [vmem:[#allocation5 + $0x7e8] sm:$0xff]
        %v487 = vld [vmem:[#allocation5 + $0x7f0] sm:$0xff]
        %v488 = vld [vmem:[#allocation5 + $0x7f8] sm:$0xff]
        %490 = vset.pattern.permute.xlu0 0
        %491 = vperm.xlu0 %490, %v232
        %v492 = vpop.permute.xlu0 %491
        %vm494 = vcmask 64512
        %v496 = vsel %vm494, %v231, 0
        %498 = vmatprep.subr.mxu0 %v230
        %499 = vmatpush1.msra.mxu0 %v229
        %500 = vmatprep.subr.mxu0 0.0
        %501 = vmatpush1.msra.mxu0 0.0
        %502 = vmatprep.subr.mxu0 0.0
        %503 = vmatpush1.msra.mxu0 0.0
        %504 = vmatprep.subr.mxu0 0.0
        %505 = vmatpush1.msra.mxu0 0.0
        %506 = vmatprep.subr.mxu0 0.0
        %507 = vmatpush1.msra.mxu0 0.0
        %508 = vmatprep.subr.mxu0 0.0
        %509 = vmatpush1.msra.mxu0 0.0
        %510 = vmatprep.subr.mxu0 0.0
        %511 = vmatpush1.msra.mxu0 0.0
        %512 = vmatprep.subr.mxu0 0.0
        %513 = vmatpush1.msra.mxu0 0.0
        %514 = vmatprep.subr.mxu0 0.0
        %515 = vmatpush1.msra.mxu0 0.0
        %516 = vmatprep.subr.mxu0 0.0
        %517 = vmatpush1.msra.mxu0 0.0
        %518 = vmatprep.subr.mxu0 0.0
        %519 = vmatpush1.msra.mxu0 0.0
        %520 = vmatprep.subr.mxu0 0.0
        %521 = vmatpush1.msra.mxu0 0.0
        %522 = vmatprep.subr.mxu0 0.0
        %523 = vmatpush1.msra.mxu0 0.0
        %524 = vmatprep.subr.mxu0 0.0
        %525 = vmatpush1.msra.mxu0 0.0
        %526 = vmatprep.subr.mxu0 0.0
        %527 = vmatpush1.msra.mxu0 0.0
        %528 = vmatprep.subr.mxu0 0.0
        %529 = vmatpush1.msra.mxu0 0.0
        %530 = vmatprep.subr.mxu0 0.0
        %531 = vmatpush1.msra.mxu0 0.0
        %532 = vmatprep.subr.mxu0 0.0
        %533 = vmatpush1.msra.mxu0 0.0
        %534 = vmatprep.subr.mxu0 0.0
        %535 = vmatpush1.msra.mxu0 0.0
        %536 = vmatprep.subr.mxu0 0.0
        %537 = vmatpush1.msra.mxu0 0.0
        %538 = vmatprep.subr.mxu0 0.0
        %539 = vmatpush1.msra.mxu0 0.0
        %540 = vmatprep.subr.mxu0 0.0
        %541 = vmatpush1.msra.mxu0 0.0
        %542 = vmatprep.subr.mxu0 0.0
        %543 = vmatpush1.msra.mxu0 0.0
        %544 = vmatprep.subr.mxu0 0.0
        %545 = vmatpush1.msra.mxu0 0.0
        %546 = vmatprep.subr.mxu0 0.0
        %547 = vmatpush1.msra.mxu0 0.0
        %548 = vmatprep.subr.mxu0 0.0
        %549 = vmatpush1.msra.mxu0 0.0
        %550 = vmatprep.subr.mxu0 0.0
        %551 = vmatpush1.msra.mxu0 0.0
        %552 = vmatprep.subr.mxu0 0.0
        %553 = vmatpush1.msra.mxu0 0.0
        %554 = vmatprep.subr.mxu0 0.0
        %555 = vmatpush1.msra.mxu0 0.0
        %556 = vmatprep.subr.mxu0 0.0
        %557 = vmatpush1.msra.mxu0 0.0
        %558 = vmatprep.subr.mxu0 0.0
        %559 = vmatpush1.msra.mxu0 0.0
        %560 = vmatprep.subr.mxu0 0.0
        %561 = vmatpush1.msra.mxu0 0.0
        %562 = vmatprep.mubr.f32.mxu0 0.0
        %563 = vmatmul.mubr.f32.gmra.mrb[0].mxu0 %v496
        %v564 = vpop.f32.mrb[0].mxu0
        %v565 = vadd.f32 %v492, %v564
        %v566 = vpop.f32.mrb[0].mxu0
        %v567 = vadd.f32 %v492, %v566
        %568 = vdwg.mxu0
        %569 = vmatprep.subr.mxu0 %v234
        %570 = vmatpush1.msra.mxu0 %v233
        %571 = vmatprep.subr.mxu0 %v242
        %572 = vmatpush1.msra.mxu0 %v241
        %573 = vmatprep.subr.mxu0 %v250
        %574 = vmatpush1.msra.mxu0 %v249
        %575 = vmatprep.subr.mxu0 %v258
        %576 = vmatpush1.msra.mxu0 %v257
        %577 = vmatprep.subr.mxu0 %v266
        %578 = vmatpush1.msra.mxu0 %v265
        %579 = vmatprep.subr.mxu0 %v274
        %580 = vmatpush1.msra.mxu0 %v273
        %581 = vmatprep.subr.mxu0 %v282
        %582 = vmatpush1.msra.mxu0 %v281
        %583 = vmatprep.subr.mxu0 %v290
        %584 = vmatpush1.msra.mxu0 %v289
        %585 = vmatprep.subr.mxu0 %v298
        %586 = vmatpush1.msra.mxu0 %v297
        %587 = vmatprep.subr.mxu0 %v306
        %588 = vmatpush1.msra.mxu0 %v305
        %589 = vmatprep.subr.mxu0 %v314
        %590 = vmatpush1.msra.mxu0 %v313
        %591 = vmatprep.subr.mxu0 %v322
        %592 = vmatpush1.msra.mxu0 %v321
        %593 = vmatprep.subr.mxu0 %v330
        %594 = vmatpush1.msra.mxu0 %v329
        %595 = vmatprep.subr.mxu0 %v338
        %596 = vmatpush1.msra.mxu0 %v337
        %597 = vmatprep.subr.mxu0 %v346
        %598 = vmatpush1.msra.mxu0 %v345
        %599 = vmatprep.subr.mxu0 %v354
        %600 = vmatpush1.msra.mxu0 %v353
        %601 = vmatprep.subr.mxu0 %v362
        %602 = vmatpush1.msra.mxu0 %v361
        %603 = vmatprep.subr.mxu0 %v370
        %604 = vmatpush1.msra.mxu0 %v369
        %605 = vmatprep.subr.mxu0 %v378
        %606 = vmatpush1.msra.mxu0 %v377
        %607 = vmatprep.subr.mxu0 %v386
        %608 = vmatpush1.msra.mxu0 %v385
        %609 = vmatprep.subr.mxu0 %v394
        %610 = vmatpush1.msra.mxu0 %v393
        %611 = vmatprep.subr.mxu0 %v402
        %612 = vmatpush1.msra.mxu0 %v401
        %613 = vmatprep.subr.mxu0 %v410
        %614 = vmatpush1.msra.mxu0 %v409
        %615 = vmatprep.subr.mxu0 %v418
        %616 = vmatpush1.msra.mxu0 %v417
        %617 = vmatprep.subr.mxu0 %v426
        %618 = vmatpush1.msra.mxu0 %v425
        %619 = vmatprep.subr.mxu0 %v434
        %620 = vmatpush1.msra.mxu0 %v433
        %621 = vmatprep.subr.mxu0 %v442
        %622 = vmatpush1.msra.mxu0 %v441
        %623 = vmatprep.subr.mxu0 %v450
        %624 = vmatpush1.msra.mxu0 %v449
        %625 = vmatprep.subr.mxu0 %v458
        %626 = vmatpush1.msra.mxu0 %v457
        %627 = vmatprep.subr.mxu0 %v466
        %628 = vmatpush1.msra.mxu0 %v465
        %629 = vmatprep.subr.mxu0 %v474
        %630 = vmatpush1.msra.mxu0 %v473
        %631 = vmatprep.subr.mxu0 %v482
        %632 = vmatpush1.msra.mxu0 %v481
        %633 = vmatprep.mubr.f32.mxu0 %v567
        %634 = vmatmul.mubr.f32.gmra.mrb[0].mxu0 %v565
        %v635 = vpop.f32.mrb[0].mxu0
        %v636 = vadd.f32 0.0, %v635
        %v637 = vpop.f32.mrb[0].mxu0
        %v638 = vadd.f32 0.0, %v637
        %639 = vdwg.mxu0
        %640 = vmatprep.subr.mxu0 %v236
        %641 = vmatpush1.msra.mxu0 %v235
        %642 = vmatprep.subr.mxu0 %v244
        %643 = vmatpush1.msra.mxu0 %v243
        %644 = vmatprep.subr.mxu0 %v252
        %645 = vmatpush1.msra.mxu0 %v251
        %646 = vmatprep.subr.mxu0 %v260
        %647 = vmatpush1.msra.mxu0 %v259
        %648 = vmatprep.subr.mxu0 %v268
        %649 = vmatpush1.msra.mxu0 %v267
        %650 = vmatprep.subr.mxu0 %v276
        %651 = vmatpush1.msra.mxu0 %v275
        %652 = vmatprep.subr.mxu0 %v284
        %653 = vmatpush1.msra.mxu0 %v283
        %654 = vmatprep.subr.mxu0 %v292
        %655 = vmatpush1.msra.mxu0 %v291
        %656 = vmatprep.subr.mxu0 %v300
        %657 = vmatpush1.msra.mxu0 %v299
        %658 = vmatprep.subr.mxu0 %v308
        %659 = vmatpush1.msra.mxu0 %v307
        %660 = vmatprep.subr.mxu0 %v316
        %661 = vmatpush1.msra.mxu0 %v315
        %662 = vmatprep.subr.mxu0 %v324
        %663 = vmatpush1.msra.mxu0 %v323
        %664 = vmatprep.subr.mxu0 %v332
        %665 = vmatpush1.msra.mxu0 %v331
        %666 = vmatprep.subr.mxu0 %v340
        %667 = vmatpush1.msra.mxu0 %v339
        %668 = vmatprep.subr.mxu0 %v348
        %669 = vmatpush1.msra.mxu0 %v347
        %670 = vmatprep.subr.mxu0 %v356
        %671 = vmatpush1.msra.mxu0 %v355
        %672 = vmatprep.subr.mxu0 %v364
        %673 = vmatpush1.msra.mxu0 %v363
        %674 = vmatprep.subr.mxu0 %v372
        %675 = vmatpush1.msra.mxu0 %v371
        %676 = vmatprep.subr.mxu0 %v380
        %677 = vmatpush1.msra.mxu0 %v379
        %678 = vmatprep.subr.mxu0 %v388
        %679 = vmatpush1.msra.mxu0 %v387
        %680 = vmatprep.subr.mxu0 %v396
        %681 = vmatpush1.msra.mxu0 %v395
        %682 = vmatprep.subr.mxu0 %v404
        %683 = vmatpush1.msra.mxu0 %v403
        %684 = vmatprep.subr.mxu0 %v412
        %685 = vmatpush1.msra.mxu0 %v411
        %686 = vmatprep.subr.mxu0 %v420
        %687 = vmatpush1.msra.mxu0 %v419
        %688 = vmatprep.subr.mxu0 %v428
        %689 = vmatpush1.msra.mxu0 %v427
        %690 = vmatprep.subr.mxu0 %v436
        %691 = vmatpush1.msra.mxu0 %v435
        %692 = vmatprep.subr.mxu0 %v444
        %693 = vmatpush1.msra.mxu0 %v443
        %694 = vmatprep.subr.mxu0 %v452
        %695 = vmatpush1.msra.mxu0 %v451
        %696 = vmatprep.subr.mxu0 %v460
        %697 = vmatpush1.msra.mxu0 %v459
        %698 = vmatprep.subr.mxu0 %v468
        %699 = vmatpush1.msra.mxu0 %v467
        %700 = vmatprep.subr.mxu0 %v476
        %701 = vmatpush1.msra.mxu0 %v475
        %702 = vmatprep.subr.mxu0 %v484
        %703 = vmatpush1.msra.mxu0 %v483
        %704 = vmatprep.mubr.f32.mxu0 %v567
        %705 = vmatmul.mubr.f32.gmra.mrb[0].mxu0 %v565
        %v706 = vpop.f32.mrb[0].mxu0
        %v707 = vadd.f32 0.0, %v706
        %v708 = vpop.f32.mrb[0].mxu0
        %v709 = vadd.f32 0.0, %v708
        %710 = vdwg.mxu0
        %711 = vmatprep.subr.mxu0 %v238
        %712 = vmatpush1.msra.mxu0 %v237
        %713 = vmatprep.subr.mxu0 %v246
        %714 = vmatpush1.msra.mxu0 %v245
        %715 = vmatprep.subr.mxu0 %v254
        %716 = vmatpush1.msra.mxu0 %v253
        %717 = vmatprep.subr.mxu0 %v262
        %718 = vmatpush1.msra.mxu0 %v261
        %719 = vmatprep.subr.mxu0 %v270
        %720 = vmatpush1.msra.mxu0 %v269
        %721 = vmatprep.subr.mxu0 %v278
        %722 = vmatpush1.msra.mxu0 %v277
        %723 = vmatprep.subr.mxu0 %v286
        %724 = vmatpush1.msra.mxu0 %v285
        %725 = vmatprep.subr.mxu0 %v294
        %726 = vmatpush1.msra.mxu0 %v293
        %727 = vmatprep.subr.mxu0 %v302
        %728 = vmatpush1.msra.mxu0 %v301
        %729 = vmatprep.subr.mxu0 %v310
        %730 = vmatpush1.msra.mxu0 %v309
        %731 = vmatprep.subr.mxu0 %v318
        %732 = vmatpush1.msra.mxu0 %v317
        %733 = vmatprep.subr.mxu0 %v326
        %734 = vmatpush1.msra.mxu0 %v325
        %735 = vmatprep.subr.mxu0 %v334
        %736 = vmatpush1.msra.mxu0 %v333
        %737 = vmatprep.subr.mxu0 %v342
        %738 = vmatpush1.msra.mxu0 %v341
        %739 = vmatprep.subr.mxu0 %v350
        %740 = vmatpush1.msra.mxu0 %v349
        %741 = vmatprep.subr.mxu0 %v358
        %742 = vmatpush1.msra.mxu0 %v357
        %743 = vmatprep.subr.mxu0 %v366
        %744 = vmatpush1.msra.mxu0 %v365
        %745 = vmatprep.subr.mxu0 %v374
        %746 = vmatpush1.msra.mxu0 %v373
        %747 = vmatprep.subr.mxu0 %v382
        %748 = vmatpush1.msra.mxu0 %v381
        %749 = vmatprep.subr.mxu0 %v390
        %750 = vmatpush1.msra.mxu0 %v389
        %751 = vmatprep.subr.mxu0 %v398
        %752 = vmatpush1.msra.mxu0 %v397
        %753 = vmatprep.subr.mxu0 %v406
        %754 = vmatpush1.msra.mxu0 %v405
        %755 = vmatprep.subr.mxu0 %v414
        %756 = vmatpush1.msra.mxu0 %v413
        %757 = vmatprep.subr.mxu0 %v422
        %758 = vmatpush1.msra.mxu0 %v421
        %759 = vmatprep.subr.mxu0 %v430
        %760 = vmatpush1.msra.mxu0 %v429
        %761 = vmatprep.subr.mxu0 %v438
        %762 = vmatpush1.msra.mxu0 %v437
        %763 = vmatprep.subr.mxu0 %v446
        %764 = vmatpush1.msra.mxu0 %v445
        %765 = vmatprep.subr.mxu0 %v454
        %766 = vmatpush1.msra.mxu0 %v453
        %767 = vmatprep.subr.mxu0 %v462
        %768 = vmatpush1.msra.mxu0 %v461
        %769 = vmatprep.subr.mxu0 %v470
        %770 = vmatpush1.msra.mxu0 %v469
        %771 = vmatprep.subr.mxu0 %v478
        %772 = vmatpush1.msra.mxu0 %v477
        %773 = vmatprep.subr.mxu0 %v486
        %774 = vmatpush1.msra.mxu0 %v485
        %775 = vmatprep.mubr.f32.mxu0 %v567
        %776 = vmatmul.mubr.f32.gmra.mrb[0].mxu0 %v565
        %v777 = vpop.f32.mrb[0].mxu0
        %v778 = vadd.f32 0.0, %v777
        %v779 = vpop.f32.mrb[0].mxu0
        %v780 = vadd.f32 0.0, %v779
        %781 = vdwg.mxu0
        %782 = vmatprep.subr.mxu0 %v240
        %783 = vmatpush1.msra.mxu0 %v239
        %784 = vmatprep.subr.mxu0 %v248
        %785 = vmatpush1.msra.mxu0 %v247
        %786 = vmatprep.subr.mxu0 %v256
        %787 = vmatpush1.msra.mxu0 %v255
        %788 = vmatprep.subr.mxu0 %v264
        %789 = vmatpush1.msra.mxu0 %v263
        %790 = vmatprep.subr.mxu0 %v272
        %791 = vmatpush1.msra.mxu0 %v271
        %792 = vmatprep.subr.mxu0 %v280
        %793 = vmatpush1.msra.mxu0 %v279
        %794 = vmatprep.subr.mxu0 %v288
        %795 = vmatpush1.msra.mxu0 %v287
        %796 = vmatprep.subr.mxu0 %v296
        %797 = vmatpush1.msra.mxu0 %v295
        %798 = vmatprep.subr.mxu0 %v304
        %799 = vmatpush1.msra.mxu0 %v303
        %800 = vmatprep.subr.mxu0 %v312
        %801 = vmatpush1.msra.mxu0 %v311
        %802 = vmatprep.subr.mxu0 %v320
        %803 = vmatpush1.msra.mxu0 %v319
        %804 = vmatprep.subr.mxu0 %v328
        %805 = vmatpush1.msra.mxu0 %v327
        %806 = vmatprep.subr.mxu0 %v336
        %807 = vmatpush1.msra.mxu0 %v335
        %808 = vmatprep.subr.mxu0 %v344
        %809 = vmatpush1.msra.mxu0 %v343
        %810 = vmatprep.subr.mxu0 %v352
        %811 = vmatpush1.msra.mxu0 %v351
        %812 = vmatprep.subr.mxu0 %v360
        %813 = vmatpush1.msra.mxu0 %v359
        %814 = vmatprep.subr.mxu0 %v368
        %815 = vmatpush1.msra.mxu0 %v367
        %816 = vmatprep.subr.mxu0 %v376
        %817 = vmatpush1.msra.mxu0 %v375
        %818 = vmatprep.subr.mxu0 %v384
        %819 = vmatpush1.msra.mxu0 %v383
        %820 = vmatprep.subr.mxu0 %v392
        %821 = vmatpush1.msra.mxu0 %v391
        %822 = vmatprep.subr.mxu0 %v400
        %823 = vmatpush1.msra.mxu0 %v399
        %824 = vmatprep.subr.mxu0 %v408
        %825 = vmatpush1.msra.mxu0 %v407
        %826 = vmatprep.subr.mxu0 %v416
        %827 = vmatpush1.msra.mxu0 %v415
        %828 = vmatprep.subr.mxu0 %v424
        %829 = vmatpush1.msra.mxu0 %v423
        %830 = vmatprep.subr.mxu0 %v432
        %831 = vmatpush1.msra.mxu0 %v431
        %832 = vmatprep.subr.mxu0 %v440
        %833 = vmatpush1.msra.mxu0 %v439
        %834 = vmatprep.subr.mxu0 %v448
        %835 = vmatpush1.msra.mxu0 %v447
        %836 = vmatprep.subr.mxu0 %v456
        %837 = vmatpush1.msra.mxu0 %v455
        %838 = vmatprep.subr.mxu0 %v464
        %839 = vmatpush1.msra.mxu0 %v463
        %840 = vmatprep.subr.mxu0 %v472
        %841 = vmatpush1.msra.mxu0 %v471
        %842 = vmatprep.subr.mxu0 %v480
        %843 = vmatpush1.msra.mxu0 %v479
        %844 = vmatprep.subr.mxu0 %v488
        %845 = vmatpush1.msra.mxu0 %v487
        %846 = vmatprep.mubr.f32.mxu0 %v567
        %847 = vmatmul.mubr.f32.gmra.mrb[0].mxu0 %v565
        %v848 = vpop.f32.mrb[0].mxu0
        %v849 = vadd.f32 0.0, %v848
        %v850 = vpop.f32.mrb[0].mxu0
        %v851 = vadd.f32 0.0, %v850
        %852 = vdwg.mxu0
        %vm853 = vcmask 1043456
        %v854 = vsel %vm853, %v636, -inf
        %v855 = vrot.slane %v854, 4
        %v856 = vmax.f32 %v854, %v855
        %v857 = vrot.slane %v856, 2
        %v858 = vmax.f32 %v856, %v857
        %v859 = vrot.slane %v858, 1
        %v860 = vmax.f32 %v858, %v859
        %v861 = vsel %vm853, %v638, -inf
        %v862 = vrot.slane %v861, 4
        %v863 = vmax.f32 %v861, %v862
        %v864 = vrot.slane %v863, 2
        %v865 = vmax.f32 %v863, %v864
        %v866 = vrot.slane %v865, 1
        %v867 = vmax.f32 %v865, %v866
        %v868 = vsel %vm853, %v707, -inf
        %v869 = vrot.slane %v868, 4
        %v870 = vmax.f32 %v868, %v869
        %v871 = vrot.slane %v870, 2
        %v872 = vmax.f32 %v870, %v871
        %v873 = vrot.slane %v872, 1
        %v874 = vmax.f32 %v872, %v873
        %v875 = vsel %vm853, %v709, -inf
        %v876 = vrot.slane %v875, 4
        %v877 = vmax.f32 %v875, %v876
        %v878 = vrot.slane %v877, 2
        %v879 = vmax.f32 %v877, %v878
        %v880 = vrot.slane %v879, 1
        %v881 = vmax.f32 %v879, %v880
        %v882 = vsel %vm853, %v778, -inf
        %v883 = vrot.slane %v882, 4
        %v884 = vmax.f32 %v882, %v883
        %v885 = vrot.slane %v884, 2
        %v886 = vmax.f32 %v884, %v885
        %v887 = vrot.slane %v886, 1
        %v888 = vmax.f32 %v886, %v887
        %v889 = vsel %vm853, %v780, -inf
        %v890 = vrot.slane %v889, 4
        %v891 = vmax.f32 %v889, %v890
        %v892 = vrot.slane %v891, 2
        %v893 = vmax.f32 %v891, %v892
        %v894 = vrot.slane %v893, 1
        %v895 = vmax.f32 %v893, %v894
        %v896 = vsel %vm853, %v849, -inf
        %v897 = vrot.slane %v896, 4
        %v898 = vmax.f32 %v896, %v897
        %v899 = vrot.slane %v898, 2
        %v900 = vmax.f32 %v898, %v899
        %v901 = vrot.slane %v900, 1
        %v902 = vmax.f32 %v900, %v901
        %v903 = vsel %vm853, %v851, -inf
        %v904 = vrot.slane %v903, 4
        %v905 = vmax.f32 %v903, %v904
        %v906 = vrot.slane %v905, 2
        %v907 = vmax.f32 %v905, %v906
        %v908 = vrot.slane %v907, 1
        %v909 = vmax.f32 %v907, %v908
        %v910 = vsub.f32 %v636, %v860
        %v911 = vsub.f32 %v638, %v867
        %v912 = vsub.f32 %v707, %v874
        %v913 = vsub.f32 %v709, %v881
        %v914 = vsub.f32 %v778, %v888
        %v915 = vsub.f32 %v780, %v895
        %v916 = vsub.f32 %v849, %v902
        %v917 = vsub.f32 %v851, %v909
        %v918 = vmul.f32 %v910, 1.442695
        %v919 = vpow.pop %v918
        %v920 = vmul.f32 %v911, 1.442695
        %v921 = vpow.pop %v920
        %v922 = vmul.f32 %v912, 1.442695
        %v923 = vpow.pop %v922
        %v924 = vmul.f32 %v913, 1.442695
        %v925 = vpow.pop %v924
        %v926 = vmul.f32 %v914, 1.442695
        %v927 = vpow.pop %v926
        %v928 = vmul.f32 %v915, 1.442695
        %v929 = vpow.pop %v928
        %v930 = vmul.f32 %v916, 1.442695
        %v931 = vpow.pop %v930
        %v932 = vmul.f32 %v917, 1.442695
        %v933 = vpow.pop %v932
        %v934 = vsel %vm853, %v919, 0.0
        %v935 = vrot.slane %v934, 4
        %v936 = vadd.f32 %v934, %v935
        %v937 = vrot.slane %v936, 2
        %v938 = vadd.f32 %v936, %v937
        %v939 = vrot.slane %v938, 1
        %v940 = vadd.f32 %v938, %v939
        %v941 = vsel %vm853, %v921, 0.0
        %v942 = vrot.slane %v941, 4
        %v943 = vadd.f32 %v941, %v942
        %v944 = vrot.slane %v943, 2
        %v945 = vadd.f32 %v943, %v944
        %v946 = vrot.slane %v945, 1
        %v947 = vadd.f32 %v945, %v946
        %v948 = vsel %vm853, %v923, 0.0
        %v949 = vrot.slane %v948, 4
        %v950 = vadd.f32 %v948, %v949
        %v951 = vrot.slane %v950, 2
        %v952 = vadd.f32 %v950, %v951
        %v953 = vrot.slane %v952, 1
        %v954 = vadd.f32 %v952, %v953
        %v955 = vsel %vm853, %v925, 0.0
        %v956 = vrot.slane %v955, 4
        %v957 = vadd.f32 %v955, %v956
        %v958 = vrot.slane %v957, 2
        %v959 = vadd.f32 %v957, %v958
        %v960 = vrot.slane %v959, 1
        %v961 = vadd.f32 %v959, %v960
        %v962 = vsel %vm853, %v927, 0.0
        %v963 = vrot.slane %v962, 4
        %v964 = vadd.f32 %v962, %v963
        %v965 = vrot.slane %v964, 2
        %v966 = vadd.f32 %v964, %v965
        %v967 = vrot.slane %v966, 1
        %v968 = vadd.f32 %v966, %v967
        %v969 = vsel %vm853, %v929, 0.0
        %v970 = vrot.slane %v969, 4
        %v971 = vadd.f32 %v969, %v970
        %v972 = vrot.slane %v971, 2
        %v973 = vadd.f32 %v971, %v972
        %v974 = vrot.slane %v973, 1
        %v975 = vadd.f32 %v973, %v974
        %v976 = vsel %vm853, %v931, 0.0
        %v977 = vrot.slane %v976, 4
        %v978 = vadd.f32 %v976, %v977
        %v979 = vrot.slane %v978, 2
        %v980 = vadd.f32 %v978, %v979
        %v981 = vrot.slane %v980, 1
        %v982 = vadd.f32 %v980, %v981
        %v983 = vsel %vm853, %v933, 0.0
        %v984 = vrot.slane %v983, 4
        %v985 = vadd.f32 %v983, %v984
        %v986 = vrot.slane %v985, 2
        %v987 = vadd.f32 %v985, %v986
        %v988 = vrot.slane %v987, 1
        %v989 = vadd.f32 %v987, %v988
        %v990 = vrcp.pop %v940
        %v991 = vrcp.pop %v947
        %v992 = vrcp.pop %v954
        %v993 = vrcp.pop %v961
        %v994 = vrcp.pop %v968
        %v995 = vrcp.pop %v975
        %v996 = vrcp.pop %v982
        %v997 = vrcp.pop %v989
        %v998 = vmul.f32 %v919, %v990
        %v999 = vmul.f32 %v921, %v991
        %v1000 = vmul.f32 %v923, %v992
        %v1001 = vmul.f32 %v925, %v993
        %v1002 = vmul.f32 %v927, %v994
        %v1003 = vmul.f32 %v929, %v995
        %v1004 = vmul.f32 %v931, %v996
        %v1005 = vmul.f32 %v933, %v997
        %v1014 = vcombine.low %v998, %v999
        %v1015 = vcombine.low %v1000, %v1001
        %v1016 = vcombine.low %v1002, %v1003
        %v1017 = vcombine.low %v1004, %v1005
        %1022 = vst [vmem:[%s228] sm:$0xff] %v1014
        %1023 = vst [vmem:[%s228 + $0x8] sm:$0xff] %v1015
        %1024 = vst [vmem:[%s228 + $0x10] sm:$0xff] %v1016
        %1025 = vst [vmem:[%s228 + $0x18] sm:$0xff] %v1017
        %s1026 = sand.u32 %s119, 1
        %s1027 = scalar_lea.sflag [#allocation4], %s1026
        %s1028 = sand.u32 %s119, 1
        %s1029 = smul.addr %s1028, 32
        %s1030 = scalar_lea.vmem [#allocation7], %s1029
        // Predicated region
        $region45: #{tpu_custom_call.1} parent=35 // pred_check
          %p1031 = pneg %p129
        $region46: #{tpu_custom_call.1} parent=35 // pred_check_branch
          %1033 = sbr.rel (%p1031) target = $region48
        $region47: #{tpu_custom_call.1} parent=35 // pred_region
          %s1035 = ssub.s32 512, 512
          %1036 = vsyncadd %s1027, %s1035
          %s1037 = smul.addr %s22, 8
          %s1038 = smul.addr %s1037, 64
          %s1039 = scalar_lea.hbm %s4, %s1038
          %s1041 = sshll.u32 %s1030, 4
          %s1042 = int_to_ptr.vmem [resolvable:$true] %s1041
          %1044 = dma.vmem_to_hbm [thread:$0]  %s1042, 512, %s1039, %s1027
        $region48: #{tpu_custom_call.1} parent=35 // pred_fallthru
          _
      $region36: #{tpu_custom_call.1} parent=5 // pred_fallthru
        _
      %p1045 = scmp.le.s32.totalorder 2, %s17
      // Predicated region
      $region49: #{tpu_custom_call.1} parent=5 // pred_check
        %p1046 = pneg %p1045
      $region50: #{tpu_custom_call.1} parent=5 // pred_check_branch
        %1048 = sbr.rel (%p1046) target = $region52
      $region51: #{tpu_custom_call.1} parent=5 // pred_region
        %s1049 = ssub.s32 %s17, 2
        // Predicated region
        $region53: #{tpu_custom_call.1} parent=51 // pred_check
          %p1050 = pneg %p135
        $region54: #{tpu_custom_call.1} parent=51 // pred_check_branch
          %1052 = sbr.rel (%p1050) target = $region56
        $region55: #{tpu_custom_call.1} parent=51 // pred_region
          %s1053 = sand.u32 %s120, 1
          %s1054 = scalar_lea.sflag [#allocation4], %s1053
          %s1055 = sand.u32 %s120, 1
          %s1056 = smul.addr %s1055, 32
          %s1057 = scalar_lea.vmem [#allocation7], %s1056
          %1058 = dma.done %s1054, 512
        $region56: #{tpu_custom_call.1} parent=51 // pred_fallthru
          _
      $region52: #{tpu_custom_call.1} parent=5 // pred_fallthru
        _
    $region6: #{tpu_custom_call.1} parent=1 // loop_footer
      %s21 = sadd.s32 1, %s17
    $region7: #{tpu_custom_call.1} parent=1 // loop_footer_branch
      %16 = sbr.rel target = $region3
    $region8: #{tpu_custom_call.1} parent=1 // loop_exit
      _
    %1059 = vsyncpa [#allocation3], 1
    %s1060 = scalar_lea.sflag [#allocation3], 1
    %1061 = vsyncpa %s1060, 1
    %1062 = vsyncpa [#allocation6], 1
    %1063 = vsyncpa [#allocation4], 1
    %s1064 = scalar_lea.sflag [#allocation4], 1
    %1065 = vsyncpa %s1064, 1

</llo_original>
